<compile_context>
chip_gen: v6e
topology: v6e:2x2x1
jax: 0.10.0
libtpu: 0.0.40
codegen_flags: <defaults>
</compile_context>

<pallas_src>
import jax
import jax.numpy as jnp
from jax.experimental import pallas as pl
from jax.experimental.pallas import tpu as pltpu
import numpy as np

# ----------------------- configuration (small, consistent) ------------------
B = 2     # batch
N = 8     # sequence / group dimension (kept by the attention)
L = 16    # region dimension reduced by the attention
D = 32    # sim_dim
EPS = 1e-8


# --------------------------------- kernel -----------------------------------
def attention_filtration_kernel(sim_ref, w_ref, b_ref, out_ref):
    # sim_ref: (B*N, L, D) VMEM   w_ref: (1, D) VMEM   b_ref: (1, 1) SMEM
    # out_ref: (B*N, D) VMEM
    sim = sim_ref[...]                                   # (BN, L, D)
    w = w_ref[...]                                       # (1, D)
    bias = b_ref[0, 0]                                   # scalar (SMEM path)

    # Linear(D -> 1): logits[r, l] = sum_d sim[r, l, d] * w[d] + b
    logits = jnp.sum(sim * w[None, :, :], axis=-1) + bias    # (BN, L)
    attn = jax.nn.sigmoid(logits)

    # l1norm over L (the permute(0,1,3,2) + dim=-1 in PyTorch == normalize the
    # attention weights over the L regions).  sigmoid output is strictly
    # positive, so abs() is dropped; divide -> multiply by exact reciprocal.
    inv_l1 = pl.reciprocal(jnp.sum(attn, axis=-1, keepdims=True) + EPS)
    attn = attn * inv_l1

    # matmul(sim_attn, sim_emb): weighted sum over L              (BN, D)
    saf = jnp.sum(attn[:, :, None] * sim, axis=1)

    # l2norm over the feature dimension (eps added AFTER sqrt, as in torch ref)
    norm = jnp.sqrt(jnp.sum(saf * saf, axis=-1, keepdims=True)) + EPS
    out_ref[...] = saf * pl.reciprocal(norm)


# -------------------------------- wrapper ------------------------------------
def attention_filtration(sim_emb, w, b):
    """sim_emb: (B, N, L, D); w: (1, D) (PyTorch Linear weight); b: (1, 1)."""
    Bv, Nv, Lv, Dv = sim_emb.shape
    # Flatten (B, N) -> one slab so the kernel runs as a single invocation
    # (no serial grid, no per-step DMA / dispatch overhead).
    sim_flat = sim_emb.reshape(Bv * Nv, Lv, Dv)
    out_flat = pl.pallas_call(
        attention_filtration_kernel,
        out_shape=jax.ShapeDtypeStruct((Bv * Nv, Dv), jnp.float32),
        in_specs=[
            pl.BlockSpec(memory_space=pltpu.MemorySpace.VMEM),   # sim (whole)
            pl.BlockSpec(memory_space=pltpu.MemorySpace.VMEM),   # weight
            pl.BlockSpec(memory_space=pltpu.MemorySpace.SMEM),   # bias (scalar)
        ],
        out_specs=pl.BlockSpec(memory_space=pltpu.MemorySpace.VMEM),
    )(sim_flat, w, b)
    return out_flat.reshape(Bv, Nv, Dv)


# ---------------------------- pure-JAX reference -----------------------------
def reference(sim_emb, w, b):
    hi = jax.lax.Precision.HIGHEST
    logits = jnp.einsum('bnld,d->bnl', sim_emb, w[0], precision=hi) + b[0, 0]
    attn = jax.nn.sigmoid(logits)
    attn = attn / (jnp.sum(jnp.abs(attn), axis=-1, keepdims=True) + EPS)
    saf = jnp.einsum('bnl,bnld->bnd', attn, sim_emb, precision=hi)
    return saf / (jnp.sqrt(jnp.sum(saf * saf, axis=-1, keepdims=True)) + EPS)


# ----------------------------------- main ------------------------------------
if __name__ == "__main__":
    key = jax.random.PRNGKey(0)
    k_sim, k_w = jax.random.split(key, 2)

    # parameters initialized like AttentionFiltration.init_weights():
    # weight ~ U(-r, r) with r = sqrt(6)/sqrt(in+out), bias = 0
    r = float(np.sqrt(6.0) / np.sqrt(D + 1))
    w = jax.random.uniform(k_w, (1, D), jnp.float32, minval=-r, maxval=r)
    b = jnp.zeros((1, 1), jnp.float32)

    sim_emb = jax.random.normal(k_sim, (B, N, L, D), jnp.float32)

    out = attention_filtration(sim_emb, w, b)
    out = jax.block_until_ready(out)

    ref = reference(sim_emb, w, b)
    ref = jax.block_until_ready(ref)

    assert out.shape == (B, N, D)
    max_err = float(jnp.max(jnp.abs(out - ref)))
    assert max_err < 1e-4, f"mismatch vs reference: {max_err}"

    print("KERNEL_OK")
</pallas_src>

<mosaic_0001>
module attributes {stable_mosaic.version = 11 : i64} {
  func.func @attention_filtration_kernel(%arg0: memref<16x16x32xf32, #tpu.memory_space<vmem>>, %arg1: memref<1x32xf32, #tpu.memory_space<vmem>>, %arg2: memref<1x1xf32, #tpu.memory_space<smem>>, %arg3: memref<16x32xf32, #tpu.memory_space<vmem>>) attributes {dimension_semantics = [], scalar_prefetch = 0 : i64, scratch_operands = 0 : i64, tpu.core_type = #tpu.core_type<tc>} {
    %c0 = arith.constant 0 : index
    %c0_0 = arith.constant 0 : index
    %c0_1 = arith.constant 0 : index
    %0 = vector.load %arg0[%c0, %c0_0, %c0_1] : memref<16x16x32xf32, #tpu.memory_space<vmem>>, vector<16x16x32xf32>
    %c0_2 = arith.constant 0 : index
    %c0_3 = arith.constant 0 : index
    %1 = vector.load %arg1[%c0_2, %c0_3] : memref<1x32xf32, #tpu.memory_space<vmem>>, vector<1x32xf32>
    %c0_4 = arith.constant 0 : index
    %c0_5 = arith.constant 0 : index
    %2 = memref.load %arg2[%c0_4, %c0_5] : memref<1x1xf32, #tpu.memory_space<smem>>
    %3 = vector.shape_cast %1 : vector<1x32xf32> to vector<1x1x32xf32>
    %4 = vector.broadcast %3 : vector<1x1x32xf32> to vector<16x16x32xf32>
    %5 = arith.mulf %0, %4 : vector<16x16x32xf32>
    %cst = arith.constant dense<0.000000e+00> : vector<16x16xf32>
    %6 = vector.multi_reduction <add>, %5, %cst [2] : vector<16x16x32xf32> to vector<16x16xf32>
    %7 = vector.broadcast %2 : f32 to vector<16x16xf32>
    %8 = arith.addf %6, %7 : vector<16x16xf32>
    %9 = arith.negf %8 : vector<16x16xf32>
    %10 = math.exp %9 : vector<16x16xf32>
    %cst_6 = arith.constant 1.000000e+00 : f32
    %11 = vector.broadcast %cst_6 : f32 to vector<16x16xf32>
    %12 = arith.addf %11, %10 : vector<16x16xf32>
    %13 = arith.divf %11, %12 : vector<16x16xf32>
    %cst_7 = arith.constant dense<0.000000e+00> : vector<16xf32>
    %14 = vector.multi_reduction <add>, %13, %cst_7 [1] : vector<16x16xf32> to vector<16xf32>
    %15 = vector.shape_cast %14 : vector<16xf32> to vector<16x1xf32>
    %cst_8 = arith.constant 9.99999993E-9 : f32
    %16 = vector.broadcast %cst_8 : f32 to vector<16x1xf32>
    %17 = arith.addf %15, %16 : vector<16x1xf32>
    %18 = tpu.reciprocal %17 : vector<16x1xf32> -> vector<16x1xf32>
    %19 = vector.broadcast %18 : vector<16x1xf32> to vector<16x16xf32>
    %20 = arith.mulf %13, %19 : vector<16x16xf32>
    %21 = vector.shape_cast %20 : vector<16x16xf32> to vector<16x16x1xf32>
    %22 = vector.broadcast %21 : vector<16x16x1xf32> to vector<16x16x32xf32>
    %23 = arith.mulf %22, %0 : vector<16x16x32xf32>
    %cst_9 = arith.constant dense<0.000000e+00> : vector<16x32xf32>
    %24 = vector.multi_reduction <add>, %23, %cst_9 [1] : vector<16x16x32xf32> to vector<16x32xf32>
    %25 = arith.mulf %24, %24 : vector<16x32xf32>
    %cst_10 = arith.constant dense<0.000000e+00> : vector<16xf32>
    %26 = vector.multi_reduction <add>, %25, %cst_10 [1] : vector<16x32xf32> to vector<16xf32>
    %27 = vector.shape_cast %26 : vector<16xf32> to vector<16x1xf32>
    %28 = math.sqrt %27 : vector<16x1xf32>
    %cst_11 = arith.constant 9.99999993E-9 : f32
    %29 = vector.broadcast %cst_11 : f32 to vector<16x1xf32>
    %30 = arith.addf %28, %29 : vector<16x1xf32>
    %31 = tpu.reciprocal %30 : vector<16x1xf32> -> vector<16x1xf32>
    %32 = vector.broadcast %31 : vector<16x1xf32> to vector<16x32xf32>
    %33 = arith.mulf %24, %32 : vector<16x32xf32>
    %c0_12 = arith.constant 0 : index
    %c0_13 = arith.constant 0 : index
    %34 = vector.load %arg3[%c0_12, %c0_13] : memref<16x32xf32, #tpu.memory_space<vmem>>, vector<16x32xf32>
    tpu.vector_store %arg3[%c0_12, %c0_13], %33 {strides = array<i32>} : memref<16x32xf32, #tpu.memory_space<vmem>>, vector<16x32xf32>,
    return
  }
}

</mosaic_0001>

<llo_original>
// kernel: tpu_custom_call.1
$region0: #{tpu_custom_call.1}
  #allocation0 [shape = 'u32[]', space=smem, size = 0x4, offset = 0x4, fixed_abs, tag = 'smem constant byte address 0x4 - core index']
  #allocation1 [shape = 'u32[144,128]{1,0:T(1,128)}', space=vmem, size = 0x12000, scoped, tag = 'internal scratch']
  #allocation2 [shape = 'f32[1,1]{1,0:T(1,128)S(6)}', space=smem, size = 0x200, scoped, tag = 'scoped memory for tpu_custom_call.1']
  %s0 = inlined_call_operand.hbm [shape: f32[16,16,32], index: 0, kind: input, shape index: {}]
  %s1 = inlined_call_operand.vmem [shape: f32[1,32], index: 1, kind: input, shape index: {}]
  %s2 = inlined_call_operand.<no memory space> [shape: f32[1,1], index: 2, kind: input, shape index: {}]
  %s3 = inlined_call_operand.hbm [shape: f32[16,32], index: 3, kind: output, shape index: {}]
  %s4 = sld [smem:[#allocation0]]
  $region26: #{tpu_custom_call.1} parent=0
    _
  %s6 = ssub.s32 1, %s4
  %s7 = scalar_select 0, %s6, %s4
  %8 = sst [smem:[#allocation2]] %s2
  $region1: #{tpu_custom_call.1} parent=0
    #allocation3 [shape = 'u8[131072]{0}', space=vmem, size = 0x20000, scoped, tag = 'input window, operand 0, single buffered']
    #allocation4 [shape = 's32[1]{0}', space=sflag, size = 0x4, scoped, tag = 'scoped memory for tpu_custom_call.1']
    #allocation5 [shape = 's32[1]{0}', space=sflag, size = 0x4, scoped, tag = 'scoped memory for tpu_custom_call.1']
    #allocation6 [shape = 'u8[8192]{0}', space=vmem, size = 0x2000, scoped, tag = 'output window, operand 0, single buffered']
    %9 = vsyncpa [#allocation4], 0
    %10 = vsyncpa [#allocation5], 0
    // Predicated region
    $region2: #{tpu_custom_call.1} parent=1 // pred_check
      _
    $region3: #{tpu_custom_call.1} parent=1 // pred_check_branch
      %12 = sbr.rel (0) target = $region5
    $region4: #{tpu_custom_call.1} parent=1 // pred_region
      %s14 = ssub.s32 4096, 4096
      %15 = vsyncadd [#allocation4], %s14
      %s16 = sshll.u32 [#allocation3], 4
      %s17 = int_to_ptr.vmem [resolvable:$true] %s16
      %22 = dma.hbm_to_vmem [thread:$0]  %s0, 4096, %s17, [#allocation4], 128, 128, 8
    $region5: #{tpu_custom_call.1} parent=1 // pred_fallthru
      _
    // Predicated region
    $region6: #{tpu_custom_call.1} parent=1 // pred_check
      _
    $region7: #{tpu_custom_call.1} parent=1 // pred_check_branch
      %24 = sbr.rel (0) target = $region9
    $region8: #{tpu_custom_call.1} parent=1 // pred_region
      _
    $region9: #{tpu_custom_call.1} parent=1 // pred_fallthru
      _
    // Predicated region
    $region10: #{tpu_custom_call.1} parent=1 // pred_check
      _
    $region11: #{tpu_custom_call.1} parent=1 // pred_check_branch
      %26 = sbr.rel (0) target = $region13
    $region12: #{tpu_custom_call.1} parent=1 // pred_region
      _
    $region13: #{tpu_custom_call.1} parent=1 // pred_fallthru
      _
    // Predicated region
    $region14: #{tpu_custom_call.1} parent=1 // pred_check
      _
    $region15: #{tpu_custom_call.1} parent=1 // pred_check_branch
      %28 = sbr.rel (0) target = $region17
    $region16: #{tpu_custom_call.1} parent=1 // pred_region
      %29 = dma.done [#allocation4], 4096
    $region17: #{tpu_custom_call.1} parent=1 // pred_fallthru
      _
    %v30 = vld [vmem:[#allocation3] sm:$0xff]
    %v31 = vld [vmem:[#allocation3 + $0x8] sm:$0xff]
    %v32 = vld [vmem:[#allocation3 + $0x10] sm:$0xff]
    %v33 = vld [vmem:[#allocation3 + $0x18] sm:$0xff]
    %v34 = vld [vmem:[#allocation3 + $0x20] sm:$0xff]
    %v35 = vld [vmem:[#allocation3 + $0x28] sm:$0xff]
    %v36 = vld [vmem:[#allocation3 + $0x30] sm:$0xff]
    %v37 = vld [vmem:[#allocation3 + $0x38] sm:$0xff]
    %v38 = vld [vmem:[#allocation3 + $0x40] sm:$0xff]
    %v39 = vld [vmem:[#allocation3 + $0x48] sm:$0xff]
    %v40 = vld [vmem:[#allocation3 + $0x50] sm:$0xff]
    %v41 = vld [vmem:[#allocation3 + $0x58] sm:$0xff]
    %v42 = vld [vmem:[#allocation3 + $0x60] sm:$0xff]
    %v43 = vld [vmem:[#allocation3 + $0x68] sm:$0xff]
    %v44 = vld [vmem:[#allocation3 + $0x70] sm:$0xff]
    %v45 = vld [vmem:[#allocation3 + $0x78] sm:$0xff]
    %v46 = vld [vmem:[#allocation3 + $0x80] sm:$0xff]
    %v47 = vld [vmem:[#allocation3 + $0x88] sm:$0xff]
    %v48 = vld [vmem:[#allocation3 + $0x90] sm:$0xff]
    %v49 = vld [vmem:[#allocation3 + $0x98] sm:$0xff]
    %v50 = vld [vmem:[#allocation3 + $0xa0] sm:$0xff]
    %v51 = vld [vmem:[#allocation3 + $0xa8] sm:$0xff]
    %v52 = vld [vmem:[#allocation3 + $0xb0] sm:$0xff]
    %v53 = vld [vmem:[#allocation3 + $0xb8] sm:$0xff]
    %v54 = vld [vmem:[#allocation3 + $0xc0] sm:$0xff]
    %v55 = vld [vmem:[#allocation3 + $0xc8] sm:$0xff]
    %v56 = vld [vmem:[#allocation3 + $0xd0] sm:$0xff]
    %v57 = vld [vmem:[#allocation3 + $0xd8] sm:$0xff]
    %v58 = vld [vmem:[#allocation3 + $0xe0] sm:$0xff]
    %v59 = vld [vmem:[#allocation3 + $0xe8] sm:$0xff]
    %v60 = vld [vmem:[#allocation3 + $0xf0] sm:$0xff]
    %v61 = vld [vmem:[#allocation3 + $0xf8] sm:$0xff]
    %v62 = vld [vmem:[%s1] sm:$0x1]
    %s63 = sld [smem:[#allocation2]]
    %v65 = vlaneseq
    %v66 = vshrl.u32 %v65, 7
    %v67 = vsub.s32 0, %v66
    %v68 = vrot.slane %v62, %v67
    %v70 = vmul.f32 %v30, %v68
    %v71 = vmul.f32 %v31, %v68
    %v72 = vmul.f32 %v32, %v68
    %v73 = vmul.f32 %v33, %v68
    %v74 = vmul.f32 %v34, %v68
    %v75 = vmul.f32 %v35, %v68
    %v76 = vmul.f32 %v36, %v68
    %v77 = vmul.f32 %v37, %v68
    %v78 = vmul.f32 %v38, %v68
    %v79 = vmul.f32 %v39, %v68
    %v80 = vmul.f32 %v40, %v68
    %v81 = vmul.f32 %v41, %v68
    %v82 = vmul.f32 %v42, %v68
    %v83 = vmul.f32 %v43, %v68
    %v84 = vmul.f32 %v44, %v68
    %v85 = vmul.f32 %v45, %v68
    %v86 = vmul.f32 %v46, %v68
    %v87 = vmul.f32 %v47, %v68
    %v88 = vmul.f32 %v48, %v68
    %v89 = vmul.f32 %v49, %v68
    %v90 = vmul.f32 %v50, %v68
    %v91 = vmul.f32 %v51, %v68
    %v92 = vmul.f32 %v52, %v68
    %v93 = vmul.f32 %v53, %v68
    %v94 = vmul.f32 %v54, %v68
    %v95 = vmul.f32 %v55, %v68
    %v96 = vmul.f32 %v56, %v68
    %v97 = vmul.f32 %v57, %v68
    %v98 = vmul.f32 %v58, %v68
    %v99 = vmul.f32 %v59, %v68
    %v100 = vmul.f32 %v60, %v68
    %v101 = vmul.f32 %v61, %v68
    %vm102 = vcmask 261120
    %v103 = vsel %vm102, %v70, 0.0
    %104 = vadd.xlane.f32.xlu0 %v103
    %v105 = vpop.xlane.xlu0 %104
    %v106 = vsel %vm102, %v71, 0.0
    %107 = vadd.xlane.f32.xlu0 %v106
    %v108 = vpop.xlane.xlu0 %107
    %v109 = vsel %vm102, %v72, 0.0
    %110 = vadd.xlane.f32.xlu0 %v109
    %v111 = vpop.xlane.xlu0 %110
    %v112 = vsel %vm102, %v73, 0.0
    %113 = vadd.xlane.f32.xlu0 %v112
    %v114 = vpop.xlane.xlu0 %113
    %v115 = vsel %vm102, %v74, 0.0
    %116 = vadd.xlane.f32.xlu0 %v115
    %v117 = vpop.xlane.xlu0 %116
    %v118 = vsel %vm102, %v75, 0.0
    %119 = vadd.xlane.f32.xlu0 %v118
    %v120 = vpop.xlane.xlu0 %119
    %v121 = vsel %vm102, %v76, 0.0
    %122 = vadd.xlane.f32.xlu0 %v121
    %v123 = vpop.xlane.xlu0 %122
    %v124 = vsel %vm102, %v77, 0.0
    %125 = vadd.xlane.f32.xlu0 %v124
    %v126 = vpop.xlane.xlu0 %125
    %v127 = vsel %vm102, %v78, 0.0
    %128 = vadd.xlane.f32.xlu0 %v127
    %v129 = vpop.xlane.xlu0 %128
    %v130 = vsel %vm102, %v79, 0.0
    %131 = vadd.xlane.f32.xlu0 %v130
    %v132 = vpop.xlane.xlu0 %131
    %v133 = vsel %vm102, %v80, 0.0
    %134 = vadd.xlane.f32.xlu0 %v133
    %v135 = vpop.xlane.xlu0 %134
    %v136 = vsel %vm102, %v81, 0.0
    %137 = vadd.xlane.f32.xlu0 %v136
    %v138 = vpop.xlane.xlu0 %137
    %v139 = vsel %vm102, %v82, 0.0
    %140 = vadd.xlane.f32.xlu0 %v139
    %v141 = vpop.xlane.xlu0 %140
    %v142 = vsel %vm102, %v83, 0.0
    %143 = vadd.xlane.f32.xlu0 %v142
    %v144 = vpop.xlane.xlu0 %143
    %v145 = vsel %vm102, %v84, 0.0
    %146 = vadd.xlane.f32.xlu0 %v145
    %v147 = vpop.xlane.xlu0 %146
    %v148 = vsel %vm102, %v85, 0.0
    %149 = vadd.xlane.f32.xlu0 %v148
    %v150 = vpop.xlane.xlu0 %149
    %v151 = vsel %vm102, %v86, 0.0
    %152 = vadd.xlane.f32.xlu0 %v151
    %v153 = vpop.xlane.xlu0 %152
    %v154 = vsel %vm102, %v87, 0.0
    %155 = vadd.xlane.f32.xlu0 %v154
    %v156 = vpop.xlane.xlu0 %155
    %v157 = vsel %vm102, %v88, 0.0
    %158 = vadd.xlane.f32.xlu0 %v157
    %v159 = vpop.xlane.xlu0 %158
    %v160 = vsel %vm102, %v89, 0.0
    %161 = vadd.xlane.f32.xlu0 %v160
    %v162 = vpop.xlane.xlu0 %161
    %v163 = vsel %vm102, %v90, 0.0
    %164 = vadd.xlane.f32.xlu0 %v163
    %v165 = vpop.xlane.xlu0 %164
    %v166 = vsel %vm102, %v91, 0.0
    %167 = vadd.xlane.f32.xlu0 %v166
    %v168 = vpop.xlane.xlu0 %167
    %v169 = vsel %vm102, %v92, 0.0
    %170 = vadd.xlane.f32.xlu0 %v169
    %v171 = vpop.xlane.xlu0 %170
    %v172 = vsel %vm102, %v93, 0.0
    %173 = vadd.xlane.f32.xlu0 %v172
    %v174 = vpop.xlane.xlu0 %173
    %v175 = vsel %vm102, %v94, 0.0
    %176 = vadd.xlane.f32.xlu0 %v175
    %v177 = vpop.xlane.xlu0 %176
    %v178 = vsel %vm102, %v95, 0.0
    %179 = vadd.xlane.f32.xlu0 %v178
    %v180 = vpop.xlane.xlu0 %179
    %v181 = vsel %vm102, %v96, 0.0
    %182 = vadd.xlane.f32.xlu0 %v181
    %v183 = vpop.xlane.xlu0 %182
    %v184 = vsel %vm102, %v97, 0.0
    %185 = vadd.xlane.f32.xlu0 %v184
    %v186 = vpop.xlane.xlu0 %185
    %v187 = vsel %vm102, %v98, 0.0
    %188 = vadd.xlane.f32.xlu0 %v187
    %v189 = vpop.xlane.xlu0 %188
    %v190 = vsel %vm102, %v99, 0.0
    %191 = vadd.xlane.f32.xlu0 %v190
    %v192 = vpop.xlane.xlu0 %191
    %v193 = vsel %vm102, %v100, 0.0
    %194 = vadd.xlane.f32.xlu0 %v193
    %v195 = vpop.xlane.xlu0 %194
    %v196 = vsel %vm102, %v101, 0.0
    %197 = vadd.xlane.f32.xlu0 %v196
    %v198 = vpop.xlane.xlu0 %197
    %v199 = vstv %s63
    %v200 = vadd.f32 %v105, %v199
    %v201 = vadd.f32 %v108, %v199
    %v202 = vadd.f32 %v111, %v199
    %v203 = vadd.f32 %v114, %v199
    %v204 = vadd.f32 %v117, %v199
    %v205 = vadd.f32 %v120, %v199
    %v206 = vadd.f32 %v123, %v199
    %v207 = vadd.f32 %v126, %v199
    %v208 = vadd.f32 %v129, %v199
    %v209 = vadd.f32 %v132, %v199
    %v210 = vadd.f32 %v135, %v199
    %v211 = vadd.f32 %v138, %v199
    %v212 = vadd.f32 %v141, %v199
    %v213 = vadd.f32 %v144, %v199
    %v214 = vadd.f32 %v147, %v199
    %v215 = vadd.f32 %v150, %v199
    %v216 = vadd.f32 %v153, %v199
    %v217 = vadd.f32 %v156, %v199
    %v218 = vadd.f32 %v159, %v199
    %v219 = vadd.f32 %v162, %v199
    %v220 = vadd.f32 %v165, %v199
    %v221 = vadd.f32 %v168, %v199
    %v222 = vadd.f32 %v171, %v199
    %v223 = vadd.f32 %v174, %v199
    %v224 = vadd.f32 %v177, %v199
    %v225 = vadd.f32 %v180, %v199
    %v226 = vadd.f32 %v183, %v199
    %v227 = vadd.f32 %v186, %v199
    %v228 = vadd.f32 %v189, %v199
    %v229 = vadd.f32 %v192, %v199
    %v230 = vadd.f32 %v195, %v199
    %v231 = vadd.f32 %v198, %v199
    %v232 = vxor.u32 %v200, 2147483648
    %v233 = vxor.u32 %v201, 2147483648
    %v234 = vxor.u32 %v202, 2147483648
    %v235 = vxor.u32 %v203, 2147483648
    %v236 = vxor.u32 %v204, 2147483648
    %v237 = vxor.u32 %v205, 2147483648
    %v238 = vxor.u32 %v206, 2147483648
    %v239 = vxor.u32 %v207, 2147483648
    %v240 = vxor.u32 %v208, 2147483648
    %v241 = vxor.u32 %v209, 2147483648
    %v242 = vxor.u32 %v210, 2147483648
    %v243 = vxor.u32 %v211, 2147483648
    %v244 = vxor.u32 %v212, 2147483648
    %v245 = vxor.u32 %v213, 2147483648
    %v246 = vxor.u32 %v214, 2147483648
    %v247 = vxor.u32 %v215, 2147483648
    %v248 = vxor.u32 %v216, 2147483648
    %v249 = vxor.u32 %v217, 2147483648
    %v250 = vxor.u32 %v218, 2147483648
    %v251 = vxor.u32 %v219, 2147483648
    %v252 = vxor.u32 %v220, 2147483648
    %v253 = vxor.u32 %v221, 2147483648
    %v254 = vxor.u32 %v222, 2147483648
    %v255 = vxor.u32 %v223, 2147483648
    %v256 = vxor.u32 %v224, 2147483648
    %v257 = vxor.u32 %v225, 2147483648
    %v258 = vxor.u32 %v226, 2147483648
    %v259 = vxor.u32 %v227, 2147483648
    %v260 = vxor.u32 %v228, 2147483648
    %v261 = vxor.u32 %v229, 2147483648
    %v262 = vxor.u32 %v230, 2147483648
    %v263 = vxor.u32 %v231, 2147483648
    %v264 = vmul.f32 %v232, 1.442695
    %v265 = vpow.pop %v264
    %v266 = vmul.f32 %v233, 1.442695
    %v267 = vpow.pop %v266
    %v268 = vmul.f32 %v234, 1.442695
    %v269 = vpow.pop %v268
    %v270 = vmul.f32 %v235, 1.442695
    %v271 = vpow.pop %v270
    %v272 = vmul.f32 %v236, 1.442695
    %v273 = vpow.pop %v272
    %v274 = vmul.f32 %v237, 1.442695
    %v275 = vpow.pop %v274
    %v276 = vmul.f32 %v238, 1.442695
    %v277 = vpow.pop %v276
    %v278 = vmul.f32 %v239, 1.442695
    %v279 = vpow.pop %v278
    %v280 = vmul.f32 %v240, 1.442695
    %v281 = vpow.pop %v280
    %v282 = vmul.f32 %v241, 1.442695
    %v283 = vpow.pop %v282
    %v284 = vmul.f32 %v242, 1.442695
    %v285 = vpow.pop %v284
    %v286 = vmul.f32 %v243, 1.442695
    %v287 = vpow.pop %v286
    %v288 = vmul.f32 %v244, 1.442695
    %v289 = vpow.pop %v288
    %v290 = vmul.f32 %v245, 1.442695
    %v291 = vpow.pop %v290
    %v292 = vmul.f32 %v246, 1.442695
    %v293 = vpow.pop %v292
    %v294 = vmul.f32 %v247, 1.442695
    %v295 = vpow.pop %v294
    %v296 = vmul.f32 %v248, 1.442695
    %v297 = vpow.pop %v296
    %v298 = vmul.f32 %v249, 1.442695
    %v299 = vpow.pop %v298
    %v300 = vmul.f32 %v250, 1.442695
    %v301 = vpow.pop %v300
    %v302 = vmul.f32 %v251, 1.442695
    %v303 = vpow.pop %v302
    %v304 = vmul.f32 %v252, 1.442695
    %v305 = vpow.pop %v304
    %v306 = vmul.f32 %v253, 1.442695
    %v307 = vpow.pop %v306
    %v308 = vmul.f32 %v254, 1.442695
    %v309 = vpow.pop %v308
    %v310 = vmul.f32 %v255, 1.442695
    %v311 = vpow.pop %v310
    %v312 = vmul.f32 %v256, 1.442695
    %v313 = vpow.pop %v312
    %v314 = vmul.f32 %v257, 1.442695
    %v315 = vpow.pop %v314
    %v316 = vmul.f32 %v258, 1.442695
    %v317 = vpow.pop %v316
    %v318 = vmul.f32 %v259, 1.442695
    %v319 = vpow.pop %v318
    %v320 = vmul.f32 %v260, 1.442695
    %v321 = vpow.pop %v320
    %v322 = vmul.f32 %v261, 1.442695
    %v323 = vpow.pop %v322
    %v324 = vmul.f32 %v262, 1.442695
    %v325 = vpow.pop %v324
    %v326 = vmul.f32 %v263, 1.442695
    %v327 = vpow.pop %v326
    %v328 = vadd.f32 %v265, 1.0
    %v329 = vadd.f32 %v267, 1.0
    %v330 = vadd.f32 %v269, 1.0
    %v331 = vadd.f32 %v271, 1.0
    %v332 = vadd.f32 %v273, 1.0
    %v333 = vadd.f32 %v275, 1.0
    %v334 = vadd.f32 %v277, 1.0
    %v335 = vadd.f32 %v279, 1.0
    %v336 = vadd.f32 %v281, 1.0
    %v337 = vadd.f32 %v283, 1.0
    %v338 = vadd.f32 %v285, 1.0
    %v339 = vadd.f32 %v287, 1.0
    %v340 = vadd.f32 %v289, 1.0
    %v341 = vadd.f32 %v291, 1.0
    %v342 = vadd.f32 %v293, 1.0
    %v343 = vadd.f32 %v295, 1.0
    %v344 = vadd.f32 %v297, 1.0
    %v345 = vadd.f32 %v299, 1.0
    %v346 = vadd.f32 %v301, 1.0
    %v347 = vadd.f32 %v303, 1.0
    %v348 = vadd.f32 %v305, 1.0
    %v349 = vadd.f32 %v307, 1.0
    %v350 = vadd.f32 %v309, 1.0
    %v351 = vadd.f32 %v311, 1.0
    %v352 = vadd.f32 %v313, 1.0
    %v353 = vadd.f32 %v315, 1.0
    %v354 = vadd.f32 %v317, 1.0
    %v355 = vadd.f32 %v319, 1.0
    %v356 = vadd.f32 %v321, 1.0
    %v357 = vadd.f32 %v323, 1.0
    %v358 = vadd.f32 %v325, 1.0
    %v359 = vadd.f32 %v327, 1.0
    %v360 = vrcp.pop %v328
    %v361 = vmul.f32 1.0, %v360
    %v362 = vrcp.pop %v329
    %v363 = vmul.f32 1.0, %v362
    %v364 = vrcp.pop %v330
    %v365 = vmul.f32 1.0, %v364
    %v366 = vrcp.pop %v331
    %v367 = vmul.f32 1.0, %v366
    %v368 = vrcp.pop %v332
    %v369 = vmul.f32 1.0, %v368
    %v370 = vrcp.pop %v333
    %v371 = vmul.f32 1.0, %v370
    %v372 = vrcp.pop %v334
    %v373 = vmul.f32 1.0, %v372
    %v374 = vrcp.pop %v335
    %v375 = vmul.f32 1.0, %v374
    %v376 = vrcp.pop %v336
    %v377 = vmul.f32 1.0, %v376
    %v378 = vrcp.pop %v337
    %v379 = vmul.f32 1.0, %v378
    %v380 = vrcp.pop %v338
    %v381 = vmul.f32 1.0, %v380
    %v382 = vrcp.pop %v339
    %v383 = vmul.f32 1.0, %v382
    %v384 = vrcp.pop %v340
    %v385 = vmul.f32 1.0, %v384
    %v386 = vrcp.pop %v341
    %v387 = vmul.f32 1.0, %v386
    %v388 = vrcp.pop %v342
    %v389 = vmul.f32 1.0, %v388
    %v390 = vrcp.pop %v343
    %v391 = vmul.f32 1.0, %v390
    %v392 = vrcp.pop %v344
    %v393 = vmul.f32 1.0, %v392
    %v394 = vrcp.pop %v345
    %v395 = vmul.f32 1.0, %v394
    %v396 = vrcp.pop %v346
    %v397 = vmul.f32 1.0, %v396
    %v398 = vrcp.pop %v347
    %v399 = vmul.f32 1.0, %v398
    %v400 = vrcp.pop %v348
    %v401 = vmul.f32 1.0, %v400
    %v402 = vrcp.pop %v349
    %v403 = vmul.f32 1.0, %v402
    %v404 = vrcp.pop %v350
    %v405 = vmul.f32 1.0, %v404
    %v406 = vrcp.pop %v351
    %v407 = vmul.f32 1.0, %v406
    %v408 = vrcp.pop %v352
    %v409 = vmul.f32 1.0, %v408
    %v410 = vrcp.pop %v353
    %v411 = vmul.f32 1.0, %v410
    %v412 = vrcp.pop %v354
    %v413 = vmul.f32 1.0, %v412
    %v414 = vrcp.pop %v355
    %v415 = vmul.f32 1.0, %v414
    %v416 = vrcp.pop %v356
    %v417 = vmul.f32 1.0, %v416
    %v418 = vrcp.pop %v357
    %v419 = vmul.f32 1.0, %v418
    %v420 = vrcp.pop %v358
    %v421 = vmul.f32 1.0, %v420
    %v422 = vrcp.pop %v359
    %v423 = vmul.f32 1.0, %v422
    %v456 = vlaneseq
    %v457 = vand.u32 %v456, 127
    %v458 = vlaneseq
    %v459 = vshrl.u32 %v458, 7
    %v460 = vsub.s32 %v457, %v459
    %v461 = vrot.slane %v361, %v460
    %v462 = vadd.s32 %v457, 4294967288
    %v463 = vlaneseq
    %v464 = vshrl.u32 %v463, 7
    %v465 = vsub.s32 %v462, %v464
    %v466 = vrot.slane %v363, %v465
    %vm467 = vcmask 130112
    %v468 = vsel %vm467, %v466, %v461
    %v469 = vlaneseq
    %v470 = vshrl.u32 %v469, 7
    %v471 = vsub.s32 %v457, %v470
    %v472 = vrot.slane %v365, %v471
    %v473 = vlaneseq
    %v474 = vshrl.u32 %v473, 7
    %v475 = vsub.s32 %v462, %v474
    %v476 = vrot.slane %v367, %v475
    %v477 = vsel %vm467, %v476, %v472
    %v478 = vlaneseq
    %v479 = vshrl.u32 %v478, 7
    %v480 = vsub.s32 %v457, %v479
    %v481 = vrot.slane %v369, %v480
    %v482 = vlaneseq
    %v483 = vshrl.u32 %v482, 7
    %v484 = vsub.s32 %v462, %v483
    %v485 = vrot.slane %v371, %v484
    %v486 = vsel %vm467, %v485, %v481
    %v487 = vlaneseq
    %v488 = vshrl.u32 %v487, 7
    %v489 = vsub.s32 %v457, %v488
    %v490 = vrot.slane %v373, %v489
    %v491 = vlaneseq
    %v492 = vshrl.u32 %v491, 7
    %v493 = vsub.s32 %v462, %v492
    %v494 = vrot.slane %v375, %v493
    %v495 = vsel %vm467, %v494, %v490
    %v496 = vlaneseq
    %v497 = vshrl.u32 %v496, 7
    %v498 = vsub.s32 %v457, %v497
    %v499 = vrot.slane %v377, %v498
    %v500 = vlaneseq
    %v501 = vshrl.u32 %v500, 7
    %v502 = vsub.s32 %v462, %v501
    %v503 = vrot.slane %v379, %v502
    %v504 = vsel %vm467, %v503, %v499
    %v505 = vlaneseq
    %v506 = vshrl.u32 %v505, 7
    %v507 = vsub.s32 %v457, %v506
    %v508 = vrot.slane %v381, %v507
    %v509 = vlaneseq
    %v510 = vshrl.u32 %v509, 7
    %v511 = vsub.s32 %v462, %v510
    %v512 = vrot.slane %v383, %v511
    %v513 = vsel %vm467, %v512, %v508
    %v514 = vlaneseq
    %v515 = vshrl.u32 %v514, 7
    %v516 = vsub.s32 %v457, %v515
    %v517 = vrot.slane %v385, %v516
    %v518 = vlaneseq
    %v519 = vshrl.u32 %v518, 7
    %v520 = vsub.s32 %v462, %v519
    %v521 = vrot.slane %v387, %v520
    %v522 = vsel %vm467, %v521, %v517
    %v523 = vlaneseq
    %v524 = vshrl.u32 %v523, 7
    %v525 = vsub.s32 %v457, %v524
    %v526 = vrot.slane %v389, %v525
    %v527 = vlaneseq
    %v528 = vshrl.u32 %v527, 7
    %v529 = vsub.s32 %v462, %v528
    %v530 = vrot.slane %v391, %v529
    %v531 = vsel %vm467, %v530, %v526
    %v532 = vlaneseq
    %v533 = vshrl.u32 %v532, 7
    %v534 = vsub.s32 %v457, %v533
    %v535 = vrot.slane %v393, %v534
    %v536 = vlaneseq
    %v537 = vshrl.u32 %v536, 7
    %v538 = vsub.s32 %v462, %v537
    %v539 = vrot.slane %v395, %v538
    %v540 = vsel %vm467, %v539, %v535
    %v541 = vlaneseq
    %v542 = vshrl.u32 %v541, 7
    %v543 = vsub.s32 %v457, %v542
    %v544 = vrot.slane %v397, %v543
    %v545 = vlaneseq
    %v546 = vshrl.u32 %v545, 7
    %v547 = vsub.s32 %v462, %v546
    %v548 = vrot.slane %v399, %v547
    %v549 = vsel %vm467, %v548, %v544
    %v550 = vlaneseq
    %v551 = vshrl.u32 %v550, 7
    %v552 = vsub.s32 %v457, %v551
    %v553 = vrot.slane %v401, %v552
    %v554 = vlaneseq
    %v555 = vshrl.u32 %v554, 7
    %v556 = vsub.s32 %v462, %v555
    %v557 = vrot.slane %v403, %v556
    %v558 = vsel %vm467, %v557, %v553
    %v559 = vlaneseq
    %v560 = vshrl.u32 %v559, 7
    %v561 = vsub.s32 %v457, %v560
    %v562 = vrot.slane %v405, %v561
    %v563 = vlaneseq
    %v564 = vshrl.u32 %v563, 7
    %v565 = vsub.s32 %v462, %v564
    %v566 = vrot.slane %v407, %v565
    %v567 = vsel %vm467, %v566, %v562
    %v568 = vlaneseq
    %v569 = vshrl.u32 %v568, 7
    %v570 = vsub.s32 %v457, %v569
    %v571 = vrot.slane %v409, %v570
    %v572 = vlaneseq
    %v573 = vshrl.u32 %v572, 7
    %v574 = vsub.s32 %v462, %v573
    %v575 = vrot.slane %v411, %v574
    %v576 = vsel %vm467, %v575, %v571
    %v577 = vlaneseq
    %v578 = vshrl.u32 %v577, 7
    %v579 = vsub.s32 %v457, %v578
    %v580 = vrot.slane %v413, %v579
    %v581 = vlaneseq
    %v582 = vshrl.u32 %v581, 7
    %v583 = vsub.s32 %v462, %v582
    %v584 = vrot.slane %v415, %v583
    %v585 = vsel %vm467, %v584, %v580
    %v586 = vlaneseq
    %v587 = vshrl.u32 %v586, 7
    %v588 = vsub.s32 %v457, %v587
    %v589 = vrot.slane %v417, %v588
    %v590 = vlaneseq
    %v591 = vshrl.u32 %v590, 7
    %v592 = vsub.s32 %v462, %v591
    %v593 = vrot.slane %v419, %v592
    %v594 = vsel %vm467, %v593, %v589
    %v595 = vlaneseq
    %v596 = vshrl.u32 %v595, 7
    %v597 = vsub.s32 %v457, %v596
    %v598 = vrot.slane %v421, %v597
    %v599 = vlaneseq
    %v600 = vshrl.u32 %v599, 7
    %v601 = vsub.s32 %v462, %v600
    %v602 = vrot.slane %v423, %v601
    %v603 = vsel %vm467, %v602, %v598
    %vm604 = vcmask 1041409
    %v605 = vsel %vm604, %v477, %v468
    %vm606 = vcmask 1042434
    %v607 = vsel %vm606, %v486, %v605
    %vm608 = vcmask 1043459
    %v609 = vsel %vm608, %v495, %v607
    %vm610 = vcmask 1044484
    %v611 = vsel %vm610, %v504, %v609
    %vm612 = vcmask 1045509
    %v613 = vsel %vm612, %v513, %v611
    %vm614 = vcmask 1046534
    %v615 = vsel %vm614, %v522, %v613
    %vm616 = vcmask 1047559
    %v617 = vsel %vm616, %v531, %v615
    %v618 = vsel %vm604, %v549, %v540
    %v619 = vsel %vm606, %v558, %v618
    %v620 = vsel %vm608, %v567, %v619
    %v621 = vsel %vm610, %v576, %v620
    %v622 = vsel %vm612, %v585, %v621
    %v623 = vsel %vm614, %v594, %v622
    %v624 = vsel %vm616, %v603, %v623
    %vm627 = vcmask 130048
    %v628 = vsel %vm627, %v617, 0.0
    %629 = vadd.xlane.f32.xlu0 %v628
    %v630 = vpop.xlane.xlu0 %629
    %v631 = vsel %vm627, %v624, 0.0
    %632 = vadd.xlane.f32.xlu0 %v631
    %v633 = vpop.xlane.xlu0 %632
    %v634 = vadd.f32 %v630, 1e-08
    %v635 = vadd.f32 %v633, 1e-08
    %v636 = vrcp.pop %v634
    %v637 = vrcp.pop %v635
    %v640 = vlaneseq
    %v641 = vshrl.u32 %v640, 7
    %v642 = vsub.s32 0, %v641
    %v643 = vrot.slane %v636, %v642
    %v644 = vlaneseq
    %v645 = vshrl.u32 %v644, 7
    %v646 = vsub.s32 1, %v645
    %v647 = vrot.slane %v636, %v646
    %v648 = vlaneseq
    %v649 = vshrl.u32 %v648, 7
    %v650 = vsub.s32 2, %v649
    %v651 = vrot.slane %v636, %v650
    %v652 = vlaneseq
    %v653 = vshrl.u32 %v652, 7
    %v654 = vsub.s32 3, %v653
    %v655 = vrot.slane %v636, %v654
    %v656 = vlaneseq
    %v657 = vshrl.u32 %v656, 7
    %v658 = vsub.s32 4, %v657
    %v659 = vrot.slane %v636, %v658
    %v660 = vlaneseq
    %v661 = vshrl.u32 %v660, 7
    %v662 = vsub.s32 5, %v661
    %v663 = vrot.slane %v636, %v662
    %v664 = vlaneseq
    %v665 = vshrl.u32 %v664, 7
    %v666 = vsub.s32 6, %v665
    %v667 = vrot.slane %v636, %v666
    %v668 = vlaneseq
    %v669 = vshrl.u32 %v668, 7
    %v670 = vsub.s32 7, %v669
    %v671 = vrot.slane %v636, %v670
    %v672 = vlaneseq
    %v673 = vshrl.u32 %v672, 7
    %v674 = vsub.s32 0, %v673
    %v675 = vrot.slane %v637, %v674
    %v676 = vlaneseq
    %v677 = vshrl.u32 %v676, 7
    %v678 = vsub.s32 1, %v677
    %v679 = vrot.slane %v637, %v678
    %v680 = vlaneseq
    %v681 = vshrl.u32 %v680, 7
    %v682 = vsub.s32 2, %v681
    %v683 = vrot.slane %v637, %v682
    %v684 = vlaneseq
    %v685 = vshrl.u32 %v684, 7
    %v686 = vsub.s32 3, %v685
    %v687 = vrot.slane %v637, %v686
    %v688 = vlaneseq
    %v689 = vshrl.u32 %v688, 7
    %v690 = vsub.s32 4, %v689
    %v691 = vrot.slane %v637, %v690
    %v692 = vlaneseq
    %v693 = vshrl.u32 %v692, 7
    %v694 = vsub.s32 5, %v693
    %v695 = vrot.slane %v637, %v694
    %v696 = vlaneseq
    %v697 = vshrl.u32 %v696, 7
    %v698 = vsub.s32 6, %v697
    %v699 = vrot.slane %v637, %v698
    %v700 = vlaneseq
    %v701 = vshrl.u32 %v700, 7
    %v702 = vsub.s32 7, %v701
    %v703 = vrot.slane %v637, %v702
    %v720 = vmul.f32 %v361, %v643
    %v721 = vmul.f32 %v363, %v643
    %v722 = vmul.f32 %v365, %v647
    %v723 = vmul.f32 %v367, %v647
    %v724 = vmul.f32 %v369, %v651
    %v725 = vmul.f32 %v371, %v651
    %v726 = vmul.f32 %v373, %v655
    %v727 = vmul.f32 %v375, %v655
    %v728 = vmul.f32 %v377, %v659
    %v729 = vmul.f32 %v379, %v659
    %v730 = vmul.f32 %v381, %v663
    %v731 = vmul.f32 %v383, %v663
    %v732 = vmul.f32 %v385, %v667
    %v733 = vmul.f32 %v387, %v667
    %v734 = vmul.f32 %v389, %v671
    %v735 = vmul.f32 %v391, %v671
    %v736 = vmul.f32 %v393, %v675
    %v737 = vmul.f32 %v395, %v675
    %v738 = vmul.f32 %v397, %v679
    %v739 = vmul.f32 %v399, %v679
    %v740 = vmul.f32 %v401, %v683
    %v741 = vmul.f32 %v403, %v683
    %v742 = vmul.f32 %v405, %v687
    %v743 = vmul.f32 %v407, %v687
    %v744 = vmul.f32 %v409, %v691
    %v745 = vmul.f32 %v411, %v691
    %v746 = vmul.f32 %v413, %v695
    %v747 = vmul.f32 %v415, %v695
    %v748 = vmul.f32 %v417, %v699
    %v749 = vmul.f32 %v419, %v699
    %v750 = vmul.f32 %v421, %v703
    %v751 = vmul.f32 %v423, %v703
    %753 = vset.pattern.permute.xlu0 0
    %754 = vperm.xlu0 %753, %v720
    %v755 = vpop.permute.xlu0 %754
    %758 = vset.pattern.permute.xlu0 0
    %759 = vperm.xlu0 %758, %v721
    %v760 = vpop.permute.xlu0 %759
    %763 = vset.pattern.permute.xlu0 0
    %764 = vperm.xlu0 %763, %v722
    %v765 = vpop.permute.xlu0 %764
    %768 = vset.pattern.permute.xlu0 0
    %769 = vperm.xlu0 %768, %v723
    %v770 = vpop.permute.xlu0 %769
    %773 = vset.pattern.permute.xlu0 0
    %774 = vperm.xlu0 %773, %v724
    %v775 = vpop.permute.xlu0 %774
    %778 = vset.pattern.permute.xlu0 0
    %779 = vperm.xlu0 %778, %v725
    %v780 = vpop.permute.xlu0 %779
    %783 = vset.pattern.permute.xlu0 0
    %784 = vperm.xlu0 %783, %v726
    %v785 = vpop.permute.xlu0 %784
    %788 = vset.pattern.permute.xlu0 0
    %789 = vperm.xlu0 %788, %v727
    %v790 = vpop.permute.xlu0 %789
    %793 = vset.pattern.permute.xlu0 0
    %794 = vperm.xlu0 %793, %v728
    %v795 = vpop.permute.xlu0 %794
    %798 = vset.pattern.permute.xlu0 0
    %799 = vperm.xlu0 %798, %v729
    %v800 = vpop.permute.xlu0 %799
    %803 = vset.pattern.permute.xlu0 0
    %804 = vperm.xlu0 %803, %v730
    %v805 = vpop.permute.xlu0 %804
    %808 = vset.pattern.permute.xlu0 0
    %809 = vperm.xlu0 %808, %v731
    %v810 = vpop.permute.xlu0 %809
    %813 = vset.pattern.permute.xlu0 0
    %814 = vperm.xlu0 %813, %v732
    %v815 = vpop.permute.xlu0 %814
    %818 = vset.pattern.permute.xlu0 0
    %819 = vperm.xlu0 %818, %v733
    %v820 = vpop.permute.xlu0 %819
    %823 = vset.pattern.permute.xlu0 0
    %824 = vperm.xlu0 %823, %v734
    %v825 = vpop.permute.xlu0 %824
    %828 = vset.pattern.permute.xlu0 0
    %829 = vperm.xlu0 %828, %v735
    %v830 = vpop.permute.xlu0 %829
    %833 = vset.pattern.permute.xlu0 0
    %834 = vperm.xlu0 %833, %v736
    %v835 = vpop.permute.xlu0 %834
    %838 = vset.pattern.permute.xlu0 0
    %839 = vperm.xlu0 %838, %v737
    %v840 = vpop.permute.xlu0 %839
    %843 = vset.pattern.permute.xlu0 0
    %844 = vperm.xlu0 %843, %v738
    %v845 = vpop.permute.xlu0 %844
    %848 = vset.pattern.permute.xlu0 0
    %849 = vperm.xlu0 %848, %v739
    %v850 = vpop.permute.xlu0 %849
    %853 = vset.pattern.permute.xlu0 0
    %854 = vperm.xlu0 %853, %v740
    %v855 = vpop.permute.xlu0 %854
    %858 = vset.pattern.permute.xlu0 0
    %859 = vperm.xlu0 %858, %v741
    %v860 = vpop.permute.xlu0 %859
    %863 = vset.pattern.permute.xlu0 0
    %864 = vperm.xlu0 %863, %v742
    %v865 = vpop.permute.xlu0 %864
    %868 = vset.pattern.permute.xlu0 0
    %869 = vperm.xlu0 %868, %v743
    %v870 = vpop.permute.xlu0 %869
    %873 = vset.pattern.permute.xlu0 0
    %874 = vperm.xlu0 %873, %v744
    %v875 = vpop.permute.xlu0 %874
    %878 = vset.pattern.permute.xlu0 0
    %879 = vperm.xlu0 %878, %v745
    %v880 = vpop.permute.xlu0 %879
    %883 = vset.pattern.permute.xlu0 0
    %884 = vperm.xlu0 %883, %v746
    %v885 = vpop.permute.xlu0 %884
    %888 = vset.pattern.permute.xlu0 0
    %889 = vperm.xlu0 %888, %v747
    %v890 = vpop.permute.xlu0 %889
    %893 = vset.pattern.permute.xlu0 0
    %894 = vperm.xlu0 %893, %v748
    %v895 = vpop.permute.xlu0 %894
    %898 = vset.pattern.permute.xlu0 0
    %899 = vperm.xlu0 %898, %v749
    %v900 = vpop.permute.xlu0 %899
    %903 = vset.pattern.permute.xlu0 0
    %904 = vperm.xlu0 %903, %v750
    %v905 = vpop.permute.xlu0 %904
    %908 = vset.pattern.permute.xlu0 0
    %909 = vperm.xlu0 %908, %v751
    %v910 = vpop.permute.xlu0 %909
    %v912 = vmul.f32 %v755, %v30
    %v913 = vmul.f32 %v760, %v31
    %v914 = vmul.f32 %v765, %v32
    %v915 = vmul.f32 %v770, %v33
    %v916 = vmul.f32 %v775, %v34
    %v917 = vmul.f32 %v780, %v35
    %v918 = vmul.f32 %v785, %v36
    %v919 = vmul.f32 %v790, %v37
    %v920 = vmul.f32 %v795, %v38
    %v921 = vmul.f32 %v800, %v39
    %v922 = vmul.f32 %v805, %v40
    %v923 = vmul.f32 %v810, %v41
    %v924 = vmul.f32 %v815, %v42
    %v925 = vmul.f32 %v820, %v43
    %v926 = vmul.f32 %v825, %v44
    %v927 = vmul.f32 %v830, %v45
    %v928 = vmul.f32 %v835, %v46
    %v929 = vmul.f32 %v840, %v47
    %v930 = vmul.f32 %v845, %v48
    %v931 = vmul.f32 %v850, %v49
    %v932 = vmul.f32 %v855, %v50
    %v933 = vmul.f32 %v860, %v51
    %v934 = vmul.f32 %v865, %v52
    %v935 = vmul.f32 %v870, %v53
    %v936 = vmul.f32 %v875, %v54
    %v937 = vmul.f32 %v880, %v55
    %v938 = vmul.f32 %v885, %v56
    %v939 = vmul.f32 %v890, %v57
    %v940 = vmul.f32 %v895, %v58
    %v941 = vmul.f32 %v900, %v59
    %v942 = vmul.f32 %v905, %v60
    %v943 = vmul.f32 %v910, %v61
    %v944 = vsel %vm102, %v912, 0.0
    %v945 = vsel %vm102, %v913, 0.0
    %v946 = vadd.f32 %v944, %v945
    %v947 = vrot.slane %v946, 4
    %v948 = vadd.f32 %v946, %v947
    %v949 = vrot.slane %v948, 2
    %v950 = vadd.f32 %v948, %v949
    %v951 = vrot.slane %v950, 1
    %v952 = vadd.f32 %v950, %v951
    %v953 = vsel %vm102, %v914, 0.0
    %v954 = vsel %vm102, %v915, 0.0
    %v955 = vadd.f32 %v953, %v954
    %v956 = vrot.slane %v955, 4
    %v957 = vadd.f32 %v955, %v956
    %v958 = vrot.slane %v957, 2
    %v959 = vadd.f32 %v957, %v958
    %v960 = vrot.slane %v959, 1
    %v961 = vadd.f32 %v959, %v960
    %v962 = vsel %vm102, %v916, 0.0
    %v963 = vsel %vm102, %v917, 0.0
    %v964 = vadd.f32 %v962, %v963
    %v965 = vrot.slane %v964, 4
    %v966 = vadd.f32 %v964, %v965
    %v967 = vrot.slane %v966, 2
    %v968 = vadd.f32 %v966, %v967
    %v969 = vrot.slane %v968, 1
    %v970 = vadd.f32 %v968, %v969
    %v971 = vsel %vm102, %v918, 0.0
    %v972 = vsel %vm102, %v919, 0.0
    %v973 = vadd.f32 %v971, %v972
    %v974 = vrot.slane %v973, 4
    %v975 = vadd.f32 %v973, %v974
    %v976 = vrot.slane %v975, 2
    %v977 = vadd.f32 %v975, %v976
    %v978 = vrot.slane %v977, 1
    %v979 = vadd.f32 %v977, %v978
    %v980 = vsel %vm102, %v920, 0.0
    %v981 = vsel %vm102, %v921, 0.0
    %v982 = vadd.f32 %v980, %v981
    %v983 = vrot.slane %v982, 4
    %v984 = vadd.f32 %v982, %v983
    %v985 = vrot.slane %v984, 2
    %v986 = vadd.f32 %v984, %v985
    %v987 = vrot.slane %v986, 1
    %v988 = vadd.f32 %v986, %v987
    %v989 = vsel %vm102, %v922, 0.0
    %v990 = vsel %vm102, %v923, 0.0
    %v991 = vadd.f32 %v989, %v990
    %v992 = vrot.slane %v991, 4
    %v993 = vadd.f32 %v991, %v992
    %v994 = vrot.slane %v993, 2
    %v995 = vadd.f32 %v993, %v994
    %v996 = vrot.slane %v995, 1
    %v997 = vadd.f32 %v995, %v996
    %v998 = vsel %vm102, %v924, 0.0
    %v999 = vsel %vm102, %v925, 0.0
    %v1000 = vadd.f32 %v998, %v999
    %v1001 = vrot.slane %v1000, 4
    %v1002 = vadd.f32 %v1000, %v1001
    %v1003 = vrot.slane %v1002, 2
    %v1004 = vadd.f32 %v1002, %v1003
    %v1005 = vrot.slane %v1004, 1
    %v1006 = vadd.f32 %v1004, %v1005
    %v1007 = vsel %vm102, %v926, 0.0
    %v1008 = vsel %vm102, %v927, 0.0
    %v1009 = vadd.f32 %v1007, %v1008
    %v1010 = vrot.slane %v1009, 4
    %v1011 = vadd.f32 %v1009, %v1010
    %v1012 = vrot.slane %v1011, 2
    %v1013 = vadd.f32 %v1011, %v1012
    %v1014 = vrot.slane %v1013, 1
    %v1015 = vadd.f32 %v1013, %v1014
    %v1016 = vsel %vm102, %v928, 0.0
    %v1017 = vsel %vm102, %v929, 0.0
    %v1018 = vadd.f32 %v1016, %v1017
    %v1019 = vrot.slane %v1018, 4
    %v1020 = vadd.f32 %v1018, %v1019
    %v1021 = vrot.slane %v1020, 2
    %v1022 = vadd.f32 %v1020, %v1021
    %v1023 = vrot.slane %v1022, 1
    %v1024 = vadd.f32 %v1022, %v1023
    %v1025 = vsel %vm102, %v930, 0.0
    %v1026 = vsel %vm102, %v931, 0.0
    %v1027 = vadd.f32 %v1025, %v1026
    %v1028 = vrot.slane %v1027, 4
    %v1029 = vadd.f32 %v1027, %v1028
    %v1030 = vrot.slane %v1029, 2
    %v1031 = vadd.f32 %v1029, %v1030
    %v1032 = vrot.slane %v1031, 1
    %v1033 = vadd.f32 %v1031, %v1032
    %v1034 = vsel %vm102, %v932, 0.0
    %v1035 = vsel %vm102, %v933, 0.0
    %v1036 = vadd.f32 %v1034, %v1035
    %v1037 = vrot.slane %v1036, 4
    %v1038 = vadd.f32 %v1036, %v1037
    %v1039 = vrot.slane %v1038, 2
    %v1040 = vadd.f32 %v1038, %v1039
    %v1041 = vrot.slane %v1040, 1
    %v1042 = vadd.f32 %v1040, %v1041
    %v1043 = vsel %vm102, %v934, 0.0
    %v1044 = vsel %vm102, %v935, 0.0
    %v1045 = vadd.f32 %v1043, %v1044
    %v1046 = vrot.slane %v1045, 4
    %v1047 = vadd.f32 %v1045, %v1046
    %v1048 = vrot.slane %v1047, 2
    %v1049 = vadd.f32 %v1047, %v1048
    %v1050 = vrot.slane %v1049, 1
    %v1051 = vadd.f32 %v1049, %v1050
    %v1052 = vsel %vm102, %v936, 0.0
    %v1053 = vsel %vm102, %v937, 0.0
    %v1054 = vadd.f32 %v1052, %v1053
    %v1055 = vrot.slane %v1054, 4
    %v1056 = vadd.f32 %v1054, %v1055
    %v1057 = vrot.slane %v1056, 2
    %v1058 = vadd.f32 %v1056, %v1057
    %v1059 = vrot.slane %v1058, 1
    %v1060 = vadd.f32 %v1058, %v1059
    %v1061 = vsel %vm102, %v938, 0.0
    %v1062 = vsel %vm102, %v939, 0.0
    %v1063 = vadd.f32 %v1061, %v1062
    %v1064 = vrot.slane %v1063, 4
    %v1065 = vadd.f32 %v1063, %v1064
    %v1066 = vrot.slane %v1065, 2
    %v1067 = vadd.f32 %v1065, %v1066
    %v1068 = vrot.slane %v1067, 1
    %v1069 = vadd.f32 %v1067, %v1068
    %v1070 = vsel %vm102, %v940, 0.0
    %v1071 = vsel %vm102, %v941, 0.0
    %v1072 = vadd.f32 %v1070, %v1071
    %v1073 = vrot.slane %v1072, 4
    %v1074 = vadd.f32 %v1072, %v1073
    %v1075 = vrot.slane %v1074, 2
    %v1076 = vadd.f32 %v1074, %v1075
    %v1077 = vrot.slane %v1076, 1
    %v1078 = vadd.f32 %v1076, %v1077
    %v1079 = vsel %vm102, %v942, 0.0
    %v1080 = vsel %vm102, %v943, 0.0
    %v1081 = vadd.f32 %v1079, %v1080
    %v1082 = vrot.slane %v1081, 4
    %v1083 = vadd.f32 %v1081, %v1082
    %v1084 = vrot.slane %v1083, 2
    %v1085 = vadd.f32 %v1083, %v1084
    %v1086 = vrot.slane %v1085, 1
    %v1087 = vadd.f32 %v1085, %v1086
    %v1088 = vmul.f32 %v952, %v952
    %v1089 = vmul.f32 %v961, %v961
    %v1090 = vmul.f32 %v970, %v970
    %v1091 = vmul.f32 %v979, %v979
    %v1092 = vmul.f32 %v988, %v988
    %v1093 = vmul.f32 %v997, %v997
    %v1094 = vmul.f32 %v1006, %v1006
    %v1095 = vmul.f32 %v1015, %v1015
    %v1096 = vmul.f32 %v1024, %v1024
    %v1097 = vmul.f32 %v1033, %v1033
    %v1098 = vmul.f32 %v1042, %v1042
    %v1099 = vmul.f32 %v1051, %v1051
    %v1100 = vmul.f32 %v1060, %v1060
    %v1101 = vmul.f32 %v1069, %v1069
    %v1102 = vmul.f32 %v1078, %v1078
    %v1103 = vmul.f32 %v1087, %v1087
    %v1120 = vsel %vm604, %v1089, %v1088
    %v1121 = vsel %vm606, %v1090, %v1120
    %v1122 = vsel %vm608, %v1091, %v1121
    %v1123 = vsel %vm610, %v1092, %v1122
    %v1124 = vsel %vm612, %v1093, %v1123
    %v1125 = vsel %vm614, %v1094, %v1124
    %v1126 = vsel %vm616, %v1095, %v1125
    %v1127 = vsel %vm604, %v1097, %v1096
    %v1128 = vsel %vm606, %v1098, %v1127
    %v1129 = vsel %vm608, %v1099, %v1128
    %v1130 = vsel %vm610, %v1100, %v1129
    %v1131 = vsel %vm612, %v1101, %v1130
    %v1132 = vsel %vm614, %v1102, %v1131
    %v1133 = vsel %vm616, %v1103, %v1132
    %v1136 = vsel %vm102, %v1126, 0.0
    %1137 = vadd.xlane.f32.xlu0 %v1136
    %v1138 = vpop.xlane.xlu0 %1137
    %v1139 = vsel %vm102, %v1133, 0.0
    %1140 = vadd.xlane.f32.xlu0 %v1139
    %v1141 = vpop.xlane.xlu0 %1140
    %v1142 = vrsqrt.pop %v1138
    %v1143 = vmul.f32 %v1138, %v1142
    %vm1144 = vcmp.eq.f32.partialorder %v1138, inf
    %v1145 = vsel %vm1144, %v1138, %v1143
    %vm1146 = vcmp.eq.f32.partialorder %v1138, 0.0
    %v1147 = vand.u32 %v1138, 2147483648
    %v1148 = vsel %vm1146, %v1147, %v1145
    %v1149 = vrsqrt.pop %v1141
    %v1150 = vmul.f32 %v1141, %v1149
    %vm1151 = vcmp.eq.f32.partialorder %v1141, inf
    %v1152 = vsel %vm1151, %v1141, %v1150
    %vm1153 = vcmp.eq.f32.partialorder %v1141, 0.0
    %v1154 = vand.u32 %v1141, 2147483648
    %v1155 = vsel %vm1153, %v1154, %v1152
    %v1156 = vadd.f32 %v1148, 1e-08
    %v1157 = vadd.f32 %v1155, 1e-08
    %v1158 = vrcp.pop %v1156
    %v1159 = vrcp.pop %v1157
    %v1162 = vrot.slane %v1158, 1
    %v1163 = vrot.slane %v1158, 2
    %v1164 = vrot.slane %v1158, 3
    %v1165 = vrot.slane %v1158, 4
    %v1166 = vrot.slane %v1158, 5
    %v1167 = vrot.slane %v1158, 6
    %v1168 = vrot.slane %v1158, 7
    %v1169 = vrot.slane %v1159, 1
    %v1170 = vrot.slane %v1159, 2
    %v1171 = vrot.slane %v1159, 3
    %v1172 = vrot.slane %v1159, 4
    %v1173 = vrot.slane %v1159, 5
    %v1174 = vrot.slane %v1159, 6
    %v1175 = vrot.slane %v1159, 7
    %v1192 = vmul.f32 %v952, %v1158
    %v1193 = vmul.f32 %v961, %v1162
    %v1194 = vmul.f32 %v970, %v1163
    %v1195 = vmul.f32 %v979, %v1164
    %v1196 = vmul.f32 %v988, %v1165
    %v1197 = vmul.f32 %v997, %v1166
    %v1198 = vmul.f32 %v1006, %v1167
    %v1199 = vmul.f32 %v1015, %v1168
    %v1200 = vmul.f32 %v1024, %v1159
    %v1201 = vmul.f32 %v1033, %v1169
    %v1202 = vmul.f32 %v1042, %v1170
    %v1203 = vmul.f32 %v1051, %v1171
    %v1204 = vmul.f32 %v1060, %v1172
    %v1205 = vmul.f32 %v1069, %v1173
    %v1206 = vmul.f32 %v1078, %v1174
    %v1207 = vmul.f32 %v1087, %v1175
    %v1224 = vrot.slane %v1193, 7
    %v1225 = vsel %vm604, %v1224, %v1192
    %v1226 = vrot.slane %v1194, 6
    %v1227 = vsel %vm606, %v1226, %v1225
    %v1228 = vrot.slane %v1195, 5
    %v1229 = vsel %vm608, %v1228, %v1227
    %v1230 = vrot.slane %v1196, 4
    %v1231 = vsel %vm610, %v1230, %v1229
    %v1232 = vrot.slane %v1197, 3
    %v1233 = vsel %vm612, %v1232, %v1231
    %v1234 = vrot.slane %v1198, 2
    %v1235 = vsel %vm614, %v1234, %v1233
    %v1236 = vrot.slane %v1199, 1
    %v1237 = vsel %vm616, %v1236, %v1235
    %v1238 = vrot.slane %v1201, 7
    %v1239 = vsel %vm604, %v1238, %v1200
    %v1240 = vrot.slane %v1202, 6
    %v1241 = vsel %vm606, %v1240, %v1239
    %v1242 = vrot.slane %v1203, 5
    %v1243 = vsel %vm608, %v1242, %v1241
    %v1244 = vrot.slane %v1204, 4
    %v1245 = vsel %vm610, %v1244, %v1243
    %v1246 = vrot.slane %v1205, 3
    %v1247 = vsel %vm612, %v1246, %v1245
    %v1248 = vrot.slane %v1206, 2
    %v1249 = vsel %vm614, %v1248, %v1247
    %v1250 = vrot.slane %v1207, 1
    %v1251 = vsel %vm616, %v1250, %v1249
    %1254 = vst.msk [vmem:[#allocation6] sm:$0xff] %vm102, %v1237
    %1255 = vst.msk [vmem:[#allocation6 + $0x8] sm:$0xff] %vm102, %v1251
    // Predicated region
    $region18: #{tpu_custom_call.1} parent=1 // pred_check
      _
    $region19: #{tpu_custom_call.1} parent=1 // pred_check_branch
      %1257 = sbr.rel (0) target = $region21
    $region20: #{tpu_custom_call.1} parent=1 // pred_region
      %s1259 = ssub.s32 256, 256
      %1260 = vsyncadd [#allocation5], %s1259
      %s1261 = sshll.u32 [#allocation6], 4
      %s1262 = int_to_ptr.vmem [resolvable:$true] %s1261
      %1267 = dma.vmem_to_hbm [thread:$0]  %s1262, 256, %s3, [#allocation5], 128, 128, 8
    $region21: #{tpu_custom_call.1} parent=1 // pred_fallthru
      _
    // Predicated region
    $region22: #{tpu_custom_call.1} parent=1 // pred_check
      _
    $region23: #{tpu_custom_call.1} parent=1 // pred_check_branch
      %1269 = sbr.rel (0) target = $region25
    $region24: #{tpu_custom_call.1} parent=1 // pred_region
      %1270 = dma.done [#allocation5], 256
    $region25: #{tpu_custom_call.1} parent=1 // pred_fallthru
      _
    %1271 = vsyncpa [#allocation4], 1
    %1272 = vsyncpa [#allocation5], 1

</llo_original>
